<compile_context>
chip_gen: v6e
topology: v6e:2x2x1
jax: 0.10.0
libtpu: 0.0.40
codegen_flags: <defaults>
</compile_context>

<pallas_src>
import math

import jax
import jax.numpy as jnp
from jax.experimental import pallas as pl
from jax.experimental.pallas import tpu as pltpu


# ------------------------------ fused kernel ------------------------------ #

def _fused_cnn_kernel(x_ref, cw_ref, b_ref, f1w_ref, f2w_ref, f3w_ref, o_ref):
    """Whole CNNBase forward for one batch tile; 6 MXU dots, no in-kernel reshapes."""
    x = x_ref[0]                 # (16*A*E*TB, 4*C)  rows (c,g,b,f,a,e,n), cols (d,h,ci)
    bias = b_ref[...]            # (6, 128) packed biases
    co = cw_ref.shape[1]         # conv output channels = 2*C
    k1 = x.shape[1]              # 4*C
    tb = o_ref.shape[0]          # batch tile

    def lane_fold(y, nblk):
        # (nblk*R, co) with the block index as the slowest row bits -> (R, nblk*co):
        # moves the next contraction factor from rows into lanes (static slices + lane concat).
        r = y.shape[0] // nblk
        return jnp.concatenate([y[k * r:(k + 1) * r, :] for k in range(nblk)], axis=-1)

    def dense(v, w, b, relu=True):
        z = jnp.dot(v, w, preferred_element_type=jnp.float32) + b
        return jnp.maximum(z, 0.0) if relu else z

    # conv stack: one dot per conv, taps folded into K.
    y = dense(x, cw_ref[0:k1, :], bias[0:1, 0:co])                                   # conv1
    y = dense(lane_fold(y, 4), cw_ref[k1:k1 + 4 * co, :], bias[1:2, 0:co])           # conv2
    y = dense(lane_fold(y, 4), cw_ref[k1 + 4 * co:k1 + 8 * co, :], bias[2:3, 0:co])  # conv3
    # y: (A*E*TB, 2C), rows ordered (a, e, n)

    # fc stack: fold the A*E spatial phases into lanes -> single fc1 dot.
    ae = y.shape[0] // tb
    h = dense(lane_fold(y, ae), f1w_ref[...], bias[3:4, 0:f1w_ref.shape[1]])         # fc1
    h = dense(h, f2w_ref[...], bias[4:5, 0:f2w_ref.shape[1]])                        # fc2
    o_ref[...] = dense(h, f3w_ref[...], bias[5:6, 0:f3w_ref.shape[1]],
                       relu=False).astype(o_ref.dtype)                               # fc3


# --------------------------- host-side data prep --------------------------- #

def _space_to_phase_rows(x, tb):
    """(B, C, H, W) NCHW -> (n_tiles, 16*A*E*tb, 4*C).

    Per tile, rows are ordered (c, g, b, f, a, e, n) and columns (d, h, ci), where
    H = 8a+4b+2c+d and W = 8e+4f+2g+h, so every conv's 2x2 taps sit in the columns
    (conv1) or in the two slowest remaining row bits (conv2/conv3 -> lane_fold).
    """
    B, C, H, W = x.shape
    A, E = H // 8, W // 8
    n_tiles = -(-B // tb)
    bp = n_tiles * tb
    if bp != B:
        x = jnp.pad(x, ((0, bp - B), (0, 0), (0, 0), (0, 0)))
    t = x.reshape(n_tiles, tb, C, A, 2, 2, 2, E, 2, 2, 2)
    # axes: 0 tile, 1 n, 2 ci, 3 a, 4 b, 5 c, 6 d, 7 e, 8 f, 9 g, 10 h
    t = t.transpose(0, 5, 9, 4, 8, 3, 7, 1, 6, 10, 2)   # (tile, c,g,b,f,a,e,n, d,h,ci)
    return t.reshape(n_tiles, 16 * A * E * tb, 4 * C)


def prepare_params(params, obs_shape):
    """Convert torch-layout weights into kernel-ready layouts (one-time, outside hot path)."""
    C, H, W = obs_shape
    A, E = H // 8, W // 8
    co = params["conv3_w"].shape[0]

    def conv_mat(w):  # (Co, Ci, 2, 2) -> (4*Ci, Co), rows ordered (kh, kw, ci)
        c_out, c_in = w.shape[0], w.shape[1]
        return jnp.transpose(w, (2, 3, 1, 0)).reshape(4 * c_in, c_out)

    # all three conv weights in one array -> one DMA descriptor, static slices in-kernel.
    c_w = jnp.concatenate([conv_mat(params["conv1_w"]),
                           conv_mat(params["conv2_w"]),
                           conv_mat(params["conv3_w"])], axis=0)      # (4C + 16C, 2C)

    # fc1: fold the NCHW flatten permutation into the weight rows, ordered (a, e, co).
    f1 = params["fc1_w"]                                              # (co*A*E, 120)
    n1 = f1.shape[1]
    f1_perm = (f1.reshape(co, A, E, n1).transpose(1, 2, 0, 3).reshape(A * E * co, n1))

    n2 = params["fc2_w"].shape[1]
    hidden = params["fc3_w"].shape[1]
    assert co <= 128 and n1 <= 128 and n2 <= 128 and hidden <= 128

    # all six biases packed into a single (6,128) VMEM tile.
    bias = jnp.zeros((6, 128), jnp.float32)
    bias = bias.at[0, :co].set(params["conv1_b"])
    bias = bias.at[1, :co].set(params["conv2_b"])
    bias = bias.at[2, :co].set(params["conv3_b"])
    bias = bias.at[3, :n1].set(params["fc1_b"])
    bias = bias.at[4, :n2].set(params["fc2_b"])
    bias = bias.at[5, :hidden].set(params["fc3_b"])

    return {"c_w": c_w, "bias": bias, "f1_w": f1_perm,
            "f2_w": params["fc2_w"], "f3_w": params["fc3_w"]}


# --------------------------------- forward --------------------------------- #

def cnn_base_forward(kp, x, *, batch_tile=64):
    """x: (B, C, H, W) f32 NCHW -> (B, hidden_size) f32, one fused Pallas call."""
    B, C, H, W = x.shape
    assert H % 8 == 0 and W % 8 == 0, "fused kernel handles spatial dims divisible by 8"
    tb = min(B, batch_tile)                      # batch tile (cap keeps VMEM use tiny on v7x)
    x0 = _space_to_phase_rows(x, tb)             # single cheap XLA rearrangement of the input
    n_tiles, rows, c4 = x0.shape
    bp = n_tiles * tb
    hidden = kp["f3_w"].shape[1]

    def resident(arr):                            # whole array, VMEM-resident across steps
        return pl.BlockSpec(arr.shape, lambda i: (0,) * arr.ndim)

    out = pl.pallas_call(
        _fused_cnn_kernel,
        out_shape=jax.ShapeDtypeStruct((bp, hidden), jnp.float32),
        grid=(n_tiles,),
        in_specs=[
            pl.BlockSpec((1, rows, c4), lambda i: (i, 0, 0)),   # batch tile of the input
            resident(kp["c_w"]),
            resident(kp["bias"]),
            resident(kp["f1_w"]),
            resident(kp["f2_w"]),
            resident(kp["f3_w"]),
        ],
        out_specs=pl.BlockSpec((tb, hidden), lambda i: (i, 0)),
        compiler_params=pltpu.CompilerParams(dimension_semantics=("parallel",)),
    )(x0, kp["c_w"], kp["bias"], kp["f1_w"], kp["f2_w"], kp["f3_w"])
    return out[:B] if bp != B else out


# ------------------------------ parameter init ----------------------------- #

def init_params(key, obs_shape, hidden_size):
    """Deterministic orthogonal init (gain=sqrt(2) for ReLU), zero biases, torch layouts."""
    C, H, W = obs_shape
    assert H >= 15 and W >= 15, "this script implements the >=15 spatial branch"
    gain = math.sqrt(2.0)
    ortho = jax.nn.initializers.orthogonal(scale=gain)
    ks = jax.random.split(key, 6)

    C2 = C * 2
    conv1_w = ortho(ks[0], (C2, C * 4)).reshape(C2, C, 2, 2).astype(jnp.float32)
    conv2_w = ortho(ks[1], (C2, C2 * 4)).reshape(C2, C2, 2, 2).astype(jnp.float32)
    conv3_w = ortho(ks[2], (C2, C2 * 4)).reshape(C2, C2, 2, 2).astype(jnp.float32)

    flat_dim = C2 * (H // 8) * (W // 8)
    fc1_w = ortho(ks[3], (flat_dim, 120)).astype(jnp.float32)   # stored (in, out)
    fc2_w = ortho(ks[4], (120, 84)).astype(jnp.float32)
    fc3_w = ortho(ks[5], (84, hidden_size)).astype(jnp.float32)

    return {
        "conv1_w": conv1_w, "conv1_b": jnp.zeros((C2,), jnp.float32),
        "conv2_w": conv2_w, "conv2_b": jnp.zeros((C2,), jnp.float32),
        "conv3_w": conv3_w, "conv3_b": jnp.zeros((C2,), jnp.float32),
        "fc1_w": fc1_w, "fc1_b": jnp.zeros((120,), jnp.float32),
        "fc2_w": fc2_w, "fc2_b": jnp.zeros((84,), jnp.float32),
        "fc3_w": fc3_w, "fc3_b": jnp.zeros((hidden_size,), jnp.float32),
    }


# --------------------------- pure-JAX reference ---------------------------- #

def reference_forward(params, x):
    hi = jax.lax.Precision.HIGHEST
    y = x
    for i in (1, 2, 3):
        w, b = params[f"conv{i}_w"], params[f"conv{i}_b"]
        y = jax.lax.conv_general_dilated(y, w, window_strides=(2, 2), padding="VALID",
                                         dimension_numbers=("NCHW", "OIHW", "NCHW"),
                                         precision=hi)
        y = jnp.maximum(y + b[None, :, None, None], 0.0)
    f = y.reshape(y.shape[0], -1)
    f = jnp.maximum(jnp.dot(f, params["fc1_w"], precision=hi) + params["fc1_b"], 0.0)
    f = jnp.maximum(jnp.dot(f, params["fc2_w"], precision=hi) + params["fc2_b"], 0.0)
    return jnp.dot(f, params["fc3_w"], precision=hi) + params["fc3_b"]


if __name__ == "__main__":
    obs_shape = (4, 16, 16)   # (C, H, W), spatial >= 15 -> 3x (conv 2x2 stride 2)
    hidden_size = 32
    batch = 2

    key = jax.random.PRNGKey(0)
    k_params, k_x = jax.random.split(key)
    params = init_params(k_params, obs_shape, hidden_size)
    kparams = prepare_params(params, obs_shape)
    x = jax.random.normal(k_x, (batch,) + obs_shape, dtype=jnp.float32)

    out = jax.block_until_ready(jax.jit(cnn_base_forward)(kparams, x))
    assert out.shape == (batch, hidden_size), out.shape

    ref = jax.block_until_ready(jax.jit(reference_forward)(params, x))
    err = float(jnp.max(jnp.abs(out - ref)))
    assert err < 1e-2, f"fused kernel mismatch vs reference, max abs err = {err}"
    print("KERNEL_OK")
</pallas_src>

<mosaic_0001>
module attributes {stable_mosaic.version = 11 : i64} {
  func.func @_fused_cnn_kernel(%arg0: i32, %arg1: memref<1x128x16xf32, #tpu.memory_space<vmem>>, %arg2: memref<80x8xf32, #tpu.memory_space<vmem>>, %arg3: memref<6x128xf32, #tpu.memory_space<vmem>>, %arg4: memref<32x120xf32, #tpu.memory_space<vmem>>, %arg5: memref<120x84xf32, #tpu.memory_space<vmem>>, %arg6: memref<84x32xf32, #tpu.memory_space<vmem>>, %arg7: memref<2x32xf32, #tpu.memory_space<vmem>>) attributes {dimension_semantics = [#tpu.dimension_semantics<parallel>], iteration_bounds = array<i64: 1>, scalar_prefetch = 0 : i64, scratch_operands = 0 : i64, tpu.core_type = #tpu.core_type<tc>, window_params = [{transform_indices = @transform_0, window_bounds = array<i64: 1, 128, 16>}, {pipeline_mode = #tpu.pipeline_mode<synchronous>, transform_indices = @transform_1, window_bounds = array<i64: 80, 8>}, {pipeline_mode = #tpu.pipeline_mode<synchronous>, transform_indices = @transform_2, window_bounds = array<i64: 6, 128>}, {pipeline_mode = #tpu.pipeline_mode<synchronous>, transform_indices = @transform_3, window_bounds = array<i64: 32, 120>}, {pipeline_mode = #tpu.pipeline_mode<synchronous>, transform_indices = @transform_4, window_bounds = array<i64: 120, 84>}, {pipeline_mode = #tpu.pipeline_mode<synchronous>, transform_indices = @transform_5, window_bounds = array<i64: 84, 32>}, {transform_indices = @transform_6, window_bounds = array<i64: 2, 32>}]} {
    %c0 = arith.constant 0 : index
    %c0_0 = arith.constant 0 : index
    %c0_1 = arith.constant 0 : index
    %0 = vector.load %arg1[%c0, %c0_0, %c0_1] : memref<1x128x16xf32, #tpu.memory_space<vmem>>, vector<1x128x16xf32>
    %1 = vector.shape_cast %0 : vector<1x128x16xf32> to vector<128x16xf32>
    %c0_2 = arith.constant 0 : index
    %c0_3 = arith.constant 0 : index
    %2 = vector.load %arg3[%c0_2, %c0_3] : memref<6x128xf32, #tpu.memory_space<vmem>>, vector<6x128xf32>
    %c0_4 = arith.constant 0 : index
    %c0_5 = arith.constant 0 : index
    %3 = vector.load %arg2[%c0_4, %c0_5] : memref<80x8xf32, #tpu.memory_space<vmem>>, vector<16x8xf32>
    %4 = vector.extract_strided_slice %2 {offsets = [0, 0], sizes = [1, 8], strides = [1, 1]} : vector<6x128xf32> to vector<1x8xf32>
    %cst = arith.constant dense<0.000000e+00> : vector<128x8xf32>
    %5 = tpu.matmul %1, %3, %cst {dimension_numbers = #tpu.dot_dimension_numbers<[1], [0], [0], [1], [0, 0, 1, 1], [], []>} : vector<128x16xf32>, vector<16x8xf32>, vector<128x8xf32> -> vector<128x8xf32>
    %6 = vector.broadcast %4 : vector<1x8xf32> to vector<128x8xf32>
    %7 = arith.addf %5, %6 : vector<128x8xf32>
    %cst_6 = arith.constant 0.000000e+00 : f32
    %8 = vector.broadcast %cst_6 : f32 to vector<128x8xf32>
    %9 = arith.maximumf %7, %8 : vector<128x8xf32>
    %10 = vector.extract_strided_slice %9 {offsets = [0, 0], sizes = [32, 8], strides = [1, 1]} : vector<128x8xf32> to vector<32x8xf32>
    %11 = vector.extract_strided_slice %9 {offsets = [32, 0], sizes = [32, 8], strides = [1, 1]} : vector<128x8xf32> to vector<32x8xf32>
    %12 = vector.extract_strided_slice %9 {offsets = [64, 0], sizes = [32, 8], strides = [1, 1]} : vector<128x8xf32> to vector<32x8xf32>
    %13 = vector.extract_strided_slice %9 {offsets = [96, 0], sizes = [32, 8], strides = [1, 1]} : vector<128x8xf32> to vector<32x8xf32>
    %14 = tpu.concatenate %10, %11, %12, %13 in 1 : vector<32x8xf32>, vector<32x8xf32>, vector<32x8xf32>, vector<32x8xf32> -> vector<32x32xf32>
    %c16 = arith.constant 16 : index
    %c0_7 = arith.constant 0 : index
    %15 = vector.load %arg2[%c16, %c0_7] : memref<80x8xf32, #tpu.memory_space<vmem>>, vector<32x8xf32>
    %16 = vector.extract_strided_slice %2 {offsets = [1, 0], sizes = [1, 8], strides = [1, 1]} : vector<6x128xf32> to vector<1x8xf32>
    %cst_8 = arith.constant dense<0.000000e+00> : vector<32x8xf32>
    %17 = tpu.matmul %14, %15, %cst_8 {dimension_numbers = #tpu.dot_dimension_numbers<[1], [0], [0], [1], [0, 0, 1, 1], [], []>} : vector<32x32xf32>, vector<32x8xf32>, vector<32x8xf32> -> vector<32x8xf32>
    %18 = vector.broadcast %16 : vector<1x8xf32> to vector<32x8xf32>
    %19 = arith.addf %17, %18 : vector<32x8xf32>
    %cst_9 = arith.constant 0.000000e+00 : f32
    %20 = vector.broadcast %cst_9 : f32 to vector<32x8xf32>
    %21 = arith.maximumf %19, %20 : vector<32x8xf32>
    %22 = vector.extract_strided_slice %21 {offsets = [0, 0], sizes = [8, 8], strides = [1, 1]} : vector<32x8xf32> to vector<8x8xf32>
    %23 = vector.extract_strided_slice %21 {offsets = [8, 0], sizes = [8, 8], strides = [1, 1]} : vector<32x8xf32> to vector<8x8xf32>
    %24 = vector.extract_strided_slice %21 {offsets = [16, 0], sizes = [8, 8], strides = [1, 1]} : vector<32x8xf32> to vector<8x8xf32>
    %25 = vector.extract_strided_slice %21 {offsets = [24, 0], sizes = [8, 8], strides = [1, 1]} : vector<32x8xf32> to vector<8x8xf32>
    %26 = tpu.concatenate %22, %23, %24, %25 in 1 : vector<8x8xf32>, vector<8x8xf32>, vector<8x8xf32>, vector<8x8xf32> -> vector<8x32xf32>
    %c48 = arith.constant 48 : index
    %c0_10 = arith.constant 0 : index
    %27 = vector.load %arg2[%c48, %c0_10] : memref<80x8xf32, #tpu.memory_space<vmem>>, vector<32x8xf32>
    %28 = vector.extract_strided_slice %2 {offsets = [2, 0], sizes = [1, 8], strides = [1, 1]} : vector<6x128xf32> to vector<1x8xf32>
    %cst_11 = arith.constant dense<0.000000e+00> : vector<8x8xf32>
    %29 = tpu.matmul %26, %27, %cst_11 {dimension_numbers = #tpu.dot_dimension_numbers<[1], [0], [0], [1], [0, 0, 1, 1], [], []>} : vector<8x32xf32>, vector<32x8xf32>, vector<8x8xf32> -> vector<8x8xf32>
    %30 = vector.broadcast %28 : vector<1x8xf32> to vector<8x8xf32>
    %31 = arith.addf %29, %30 : vector<8x8xf32>
    %cst_12 = arith.constant 0.000000e+00 : f32
    %32 = vector.broadcast %cst_12 : f32 to vector<8x8xf32>
    %33 = arith.maximumf %31, %32 : vector<8x8xf32>
    %34 = vector.extract_strided_slice %33 {offsets = [0, 0], sizes = [2, 8], strides = [1, 1]} : vector<8x8xf32> to vector<2x8xf32>
    %35 = vector.extract_strided_slice %33 {offsets = [2, 0], sizes = [2, 8], strides = [1, 1]} : vector<8x8xf32> to vector<2x8xf32>
    %36 = vector.extract_strided_slice %33 {offsets = [4, 0], sizes = [2, 8], strides = [1, 1]} : vector<8x8xf32> to vector<2x8xf32>
    %37 = vector.extract_strided_slice %33 {offsets = [6, 0], sizes = [2, 8], strides = [1, 1]} : vector<8x8xf32> to vector<2x8xf32>
    %38 = tpu.concatenate %34, %35, %36, %37 in 1 : vector<2x8xf32>, vector<2x8xf32>, vector<2x8xf32>, vector<2x8xf32> -> vector<2x32xf32>
    %c0_13 = arith.constant 0 : index
    %c0_14 = arith.constant 0 : index
    %39 = vector.load %arg4[%c0_13, %c0_14] : memref<32x120xf32, #tpu.memory_space<vmem>>, vector<32x120xf32>
    %40 = vector.extract_strided_slice %2 {offsets = [3, 0], sizes = [1, 120], strides = [1, 1]} : vector<6x128xf32> to vector<1x120xf32>
    %cst_15 = arith.constant dense<0.000000e+00> : vector<2x120xf32>
    %41 = tpu.matmul %38, %39, %cst_15 {dimension_numbers = #tpu.dot_dimension_numbers<[1], [0], [0], [1], [0, 0, 1, 1], [], []>} : vector<2x32xf32>, vector<32x120xf32>, vector<2x120xf32> -> vector<2x120xf32>
    %42 = vector.broadcast %40 : vector<1x120xf32> to vector<2x120xf32>
    %43 = arith.addf %41, %42 : vector<2x120xf32>
    %cst_16 = arith.constant 0.000000e+00 : f32
    %44 = vector.broadcast %cst_16 : f32 to vector<2x120xf32>
    %45 = arith.maximumf %43, %44 : vector<2x120xf32>
    %c0_17 = arith.constant 0 : index
    %c0_18 = arith.constant 0 : index
    %46 = vector.load %arg5[%c0_17, %c0_18] : memref<120x84xf32, #tpu.memory_space<vmem>>, vector<120x84xf32>
    %47 = vector.extract_strided_slice %2 {offsets = [4, 0], sizes = [1, 84], strides = [1, 1]} : vector<6x128xf32> to vector<1x84xf32>
    %cst_19 = arith.constant dense<0.000000e+00> : vector<2x84xf32>
    %48 = tpu.matmul %45, %46, %cst_19 {dimension_numbers = #tpu.dot_dimension_numbers<[1], [0], [0], [1], [0, 0, 1, 1], [], []>} : vector<2x120xf32>, vector<120x84xf32>, vector<2x84xf32> -> vector<2x84xf32>
    %49 = vector.broadcast %47 : vector<1x84xf32> to vector<2x84xf32>
    %50 = arith.addf %48, %49 : vector<2x84xf32>
    %cst_20 = arith.constant 0.000000e+00 : f32
    %51 = vector.broadcast %cst_20 : f32 to vector<2x84xf32>
    %52 = arith.maximumf %50, %51 : vector<2x84xf32>
    %c0_21 = arith.constant 0 : index
    %c0_22 = arith.constant 0 : index
    %53 = vector.load %arg6[%c0_21, %c0_22] : memref<84x32xf32, #tpu.memory_space<vmem>>, vector<84x32xf32>
    %54 = vector.extract_strided_slice %2 {offsets = [5, 0], sizes = [1, 32], strides = [1, 1]} : vector<6x128xf32> to vector<1x32xf32>
    %cst_23 = arith.constant dense<0.000000e+00> : vector<2x32xf32>
    %55 = tpu.matmul %52, %53, %cst_23 {dimension_numbers = #tpu.dot_dimension_numbers<[1], [0], [0], [1], [0, 0, 1, 1], [], []>} : vector<2x84xf32>, vector<84x32xf32>, vector<2x32xf32> -> vector<2x32xf32>
    %56 = vector.broadcast %54 : vector<1x32xf32> to vector<2x32xf32>
    %57 = arith.addf %55, %56 : vector<2x32xf32>
    %c0_24 = arith.constant 0 : index
    %c0_25 = arith.constant 0 : index
    %58 = vector.load %arg7[%c0_24, %c0_25] : memref<2x32xf32, #tpu.memory_space<vmem>>, vector<2x32xf32>
    tpu.vector_store %arg7[%c0_24, %c0_25], %57 {strides = array<i32>} : memref<2x32xf32, #tpu.memory_space<vmem>>, vector<2x32xf32>,
    return
  }
  func.func @transform_0(%arg0: i32) -> (i32, i32, i32) {
    %c0_i32 = arith.constant 0 : i32
    %c0_i32_0 = arith.constant 0 : i32
    %c0_i32_1 = arith.constant 0 : i32
    return %arg0, %c0_i32, %c0_i32_0 : i32, i32, i32
  }
  func.func @transform_1(%arg0: i32) -> (i32, i32) {
    %c0_i32 = arith.constant 0 : i32
    %c0_i32_0 = arith.constant 0 : i32
    %c0_i32_1 = arith.constant 0 : i32
    return %c0_i32, %c0_i32_0 : i32, i32
  }
  func.func @transform_2(%arg0: i32) -> (i32, i32) {
    %c0_i32 = arith.constant 0 : i32
    %c0_i32_0 = arith.constant 0 : i32
    %c0_i32_1 = arith.constant 0 : i32
    return %c0_i32, %c0_i32_0 : i32, i32
  }
  func.func @transform_3(%arg0: i32) -> (i32, i32) {
    %c0_i32 = arith.constant 0 : i32
    %c0_i32_0 = arith.constant 0 : i32
    %c0_i32_1 = arith.constant 0 : i32
    return %c0_i32, %c0_i32_0 : i32, i32
  }
  func.func @transform_4(%arg0: i32) -> (i32, i32) {
    %c0_i32 = arith.constant 0 : i32
    %c0_i32_0 = arith.constant 0 : i32
    %c0_i32_1 = arith.constant 0 : i32
    return %c0_i32, %c0_i32_0 : i32, i32
  }
  func.func @transform_5(%arg0: i32) -> (i32, i32) {
    %c0_i32 = arith.constant 0 : i32
    %c0_i32_0 = arith.constant 0 : i32
    %c0_i32_1 = arith.constant 0 : i32
    return %c0_i32, %c0_i32_0 : i32, i32
  }
  func.func @transform_6(%arg0: i32) -> (i32, i32) {
    %c0_i32 = arith.constant 0 : i32
    %c0_i32_0 = arith.constant 0 : i32
    return %arg0, %c0_i32 : i32, i32
  }
}

</mosaic_0001>

<llo_original>
// kernel: cnn_base_forward.1
$region0: #{cnn_base_forward.1}
  #allocation0 [shape = 'u32[]', space=smem, size = 0x4, offset = 0x4, fixed_abs, tag = 'smem constant byte address 0x4 - core index']
  #allocation1 [shape = 'u32[144,128]{1,0:T(1,128)}', space=vmem, size = 0x12000, scoped, tag = 'internal scratch']
  %s0 = inlined_call_operand.vmem [shape: f32[1,128,16], index: 0, kind: input, shape index: {}]
  %s1 = inlined_call_operand.vmem [shape: f32[80,8], index: 1, kind: input, shape index: {}]
  %s2 = inlined_call_operand.vmem [shape: f32[6,128], index: 2, kind: input, shape index: {}]
  %s3 = inlined_call_operand.vmem [shape: f32[32,120], index: 3, kind: input, shape index: {}]
  %s4 = inlined_call_operand.vmem [shape: f32[120,84], index: 4, kind: input, shape index: {}]
  %s5 = inlined_call_operand.vmem [shape: f32[84,32], index: 5, kind: input, shape index: {}]
  %s6 = inlined_call_operand.hbm [shape: f32[2,32], index: 6, kind: output, shape index: {}]
  %s7 = sld [smem:[#allocation0]]
  $region34: #{cnn_base_forward.1} parent=0
    _
  %s9 = ssub.s32 1, %s7
  %s10 = scalar_select 0, %s9, %s7
  $region1: #{cnn_base_forward.1} parent=0
    #allocation2 [shape = 'u8[1024]{0}', space=vmem, size = 0x400, scoped, tag = 'output window, operand 0, single buffered']
    #allocation3 [shape = 's32[1]{0}', space=sflag, size = 0x4, scoped, tag = 'scoped memory for cnn_base_forward.1']
    %11 = vsyncpa [#allocation3], 0
    // Predicated region
    $region2: #{cnn_base_forward.1} parent=1 // pred_check
      _
    $region3: #{cnn_base_forward.1} parent=1 // pred_check_branch
      %13 = sbr.rel (0) target = $region5
    $region4: #{cnn_base_forward.1} parent=1 // pred_region
      _
    $region5: #{cnn_base_forward.1} parent=1 // pred_fallthru
      _
    // Predicated region
    $region6: #{cnn_base_forward.1} parent=1 // pred_check
      _
    $region7: #{cnn_base_forward.1} parent=1 // pred_check_branch
      %15 = sbr.rel (0) target = $region9
    $region8: #{cnn_base_forward.1} parent=1 // pred_region
      _
    $region9: #{cnn_base_forward.1} parent=1 // pred_fallthru
      _
    // Predicated region
    $region10: #{cnn_base_forward.1} parent=1 // pred_check
      _
    $region11: #{cnn_base_forward.1} parent=1 // pred_check_branch
      %17 = sbr.rel (0) target = $region13
    $region12: #{cnn_base_forward.1} parent=1 // pred_region
      _
    $region13: #{cnn_base_forward.1} parent=1 // pred_fallthru
      _
    // Predicated region
    $region14: #{cnn_base_forward.1} parent=1 // pred_check
      _
    $region15: #{cnn_base_forward.1} parent=1 // pred_check_branch
      %19 = sbr.rel (0) target = $region17
    $region16: #{cnn_base_forward.1} parent=1 // pred_region
      _
    $region17: #{cnn_base_forward.1} parent=1 // pred_fallthru
      _
    // Predicated region
    $region18: #{cnn_base_forward.1} parent=1 // pred_check
      _
    $region19: #{cnn_base_forward.1} parent=1 // pred_check_branch
      %21 = sbr.rel (0) target = $region21
    $region20: #{cnn_base_forward.1} parent=1 // pred_region
      _
    $region21: #{cnn_base_forward.1} parent=1 // pred_fallthru
      _
    // Predicated region
    $region22: #{cnn_base_forward.1} parent=1 // pred_check
      _
    $region23: #{cnn_base_forward.1} parent=1 // pred_check_branch
      %23 = sbr.rel (0) target = $region25
    $region24: #{cnn_base_forward.1} parent=1 // pred_region
      _
    $region25: #{cnn_base_forward.1} parent=1 // pred_fallthru
      _
    %v24 = vld [vmem:[%s0] sm:$0xff]
    %v25 = vld [vmem:[%s0 + $0x8] sm:$0xff]
    %v26 = vld [vmem:[%s0 + $0x10] sm:$0xff]
    %v27 = vld [vmem:[%s0 + $0x18] sm:$0xff]
    %v28 = vld [vmem:[%s0 + $0x20] sm:$0xff]
    %v29 = vld [vmem:[%s0 + $0x28] sm:$0xff]
    %v30 = vld [vmem:[%s0 + $0x30] sm:$0xff]
    %v31 = vld [vmem:[%s0 + $0x38] sm:$0xff]
    %v32 = vld [vmem:[%s0 + $0x40] sm:$0xff]
    %v33 = vld [vmem:[%s0 + $0x48] sm:$0xff]
    %v34 = vld [vmem:[%s0 + $0x50] sm:$0xff]
    %v35 = vld [vmem:[%s0 + $0x58] sm:$0xff]
    %v36 = vld [vmem:[%s0 + $0x60] sm:$0xff]
    %v37 = vld [vmem:[%s0 + $0x68] sm:$0xff]
    %v38 = vld [vmem:[%s0 + $0x70] sm:$0xff]
    %v39 = vld [vmem:[%s0 + $0x78] sm:$0xff]
    %v40 = vld [vmem:[%s2] sm:$0x3f]
    %v41 = vld [vmem:[%s1] sm:$0xff]
    %v42 = vld [vmem:[%s1 + $0x8] sm:$0xff]
    %v43 = vlaneseq
    %v44 = vshrl.u32 %v43, 7
    %v45 = vsub.s32 0, %v44
    %v46 = vrot.slane %v40, %v45
    %vm47 = vcmask 130048
    %v49 = vsel %vm47, %v24, 0
    %v52 = vsel %vm47, %v25, 0
    %v55 = vsel %vm47, %v26, 0
    %v58 = vsel %vm47, %v27, 0
    %v61 = vsel %vm47, %v28, 0
    %v64 = vsel %vm47, %v29, 0
    %v67 = vsel %vm47, %v30, 0
    %v70 = vsel %vm47, %v31, 0
    %v73 = vsel %vm47, %v32, 0
    %v76 = vsel %vm47, %v33, 0
    %v79 = vsel %vm47, %v34, 0
    %v82 = vsel %vm47, %v35, 0
    %v85 = vsel %vm47, %v36, 0
    %v88 = vsel %vm47, %v37, 0
    %v91 = vsel %vm47, %v38, 0
    %v94 = vsel %vm47, %v39, 0
    %96 = vmatprep.subr.mxu0 0.0
    %97 = vmatpush1.msra.mxu0 0.0
    %98 = vmatprep.subr.mxu0 0.0
    %99 = vmatpush1.msra.mxu0 0.0
    %100 = vmatprep.subr.mxu0 0.0
    %101 = vmatpush1.msra.mxu0 0.0
    %102 = vmatprep.subr.mxu0 0.0
    %103 = vmatpush1.msra.mxu0 0.0
    %104 = vmatprep.subr.mxu0 0.0
    %105 = vmatpush1.msra.mxu0 0.0
    %106 = vmatprep.subr.mxu0 0.0
    %107 = vmatpush1.msra.mxu0 0.0
    %108 = vmatprep.subr.mxu0 0.0
    %109 = vmatpush1.msra.mxu0 0.0
    %110 = vmatprep.subr.mxu0 0.0
    %111 = vmatpush1.msra.mxu0 0.0
    %112 = vmatprep.subr.mxu0 0.0
    %113 = vmatpush1.msra.mxu0 0.0
    %114 = vmatprep.subr.mxu0 0.0
    %115 = vmatpush1.msra.mxu0 0.0
    %116 = vmatprep.subr.mxu0 0.0
    %117 = vmatpush1.msra.mxu0 0.0
    %118 = vmatprep.subr.mxu0 0.0
    %119 = vmatpush1.msra.mxu0 0.0
    %120 = vmatprep.subr.mxu0 0.0
    %121 = vmatpush1.msra.mxu0 0.0
    %122 = vmatprep.subr.mxu0 0.0
    %123 = vmatpush1.msra.mxu0 0.0
    %124 = vmatprep.subr.mxu0 0.0
    %125 = vmatpush1.msra.mxu0 %v42
    %126 = vmatprep.subr.mxu0 0.0
    %127 = vmatpush1.msra.mxu0 %v41
    %128 = vmatprep.subr.mxu0 0.0
    %129 = vmatpush2.msra.mxu0 0.0
    %130 = vmatprep.subr.mxu0 0.0
    %131 = vmatpush2.msra.mxu0 0.0
    %132 = vmatprep.subr.mxu0 0.0
    %133 = vmatpush2.msra.mxu0 0.0
    %134 = vmatprep.subr.mxu0 0.0
    %135 = vmatpush2.msra.mxu0 0.0
    %136 = vmatprep.subr.mxu0 0.0
    %137 = vmatpush2.msra.mxu0 0.0
    %138 = vmatprep.subr.mxu0 0.0
    %139 = vmatpush2.msra.mxu0 0.0
    %140 = vmatprep.subr.mxu0 0.0
    %141 = vmatpush2.msra.mxu0 0.0
    %142 = vmatprep.subr.mxu0 0.0
    %143 = vmatpush2.msra.mxu0 0.0
    %144 = vmatprep.subr.mxu0 0.0
    %145 = vmatpush2.msra.mxu0 0.0
    %146 = vmatprep.subr.mxu0 0.0
    %147 = vmatpush2.msra.mxu0 0.0
    %148 = vmatprep.subr.mxu0 0.0
    %149 = vmatpush2.msra.mxu0 0.0
    %150 = vmatprep.subr.mxu0 0.0
    %151 = vmatpush2.msra.mxu0 0.0
    %152 = vmatprep.subr.mxu0 0.0
    %153 = vmatpush2.msra.mxu0 0.0
    %154 = vmatprep.subr.mxu0 0.0
    %155 = vmatpush2.msra.mxu0 0.0
    %156 = vmatprep.subr.mxu0 0.0
    %157 = vmatpush2.msra.mxu0 0.0
    %158 = vmatprep.subr.mxu0 0.0
    %159 = vmatpush2.msra.mxu0 0.0
    %160 = vmatprep.mubr.f32.mxu0 0.0
    %161 = vmatmul.mubr.f32.gmra.mxu0 %v49
    %v162 = vpop.f32.mrf.mxu0
    %v163 = vadd.f32 %v46, %v162
    %v164 = vpop.f32.mrf.mxu0
    %165 = vmatprep.mubr.f32.mxu0 0.0
    %166 = vmatmul.mubr.f32.gmra.mxu0 %v52
    %v167 = vpop.f32.mrf.mxu0
    %v168 = vadd.f32 %v46, %v167
    %v169 = vpop.f32.mrf.mxu0
    %170 = vmatprep.mubr.f32.mxu0 0.0
    %171 = vmatmul.mubr.f32.gmra.mxu0 %v55
    %v172 = vpop.f32.mrf.mxu0
    %v173 = vadd.f32 %v46, %v172
    %v174 = vpop.f32.mrf.mxu0
    %175 = vmatprep.mubr.f32.mxu0 0.0
    %176 = vmatmul.mubr.f32.gmra.mxu0 %v58
    %v177 = vpop.f32.mrf.mxu0
    %v178 = vadd.f32 %v46, %v177
    %v179 = vpop.f32.mrf.mxu0
    %180 = vmatprep.mubr.f32.mxu0 0.0
    %181 = vmatmul.mubr.f32.gmra.mxu0 %v61
    %v182 = vpop.f32.mrf.mxu0
    %v183 = vadd.f32 %v46, %v182
    %v184 = vpop.f32.mrf.mxu0
    %185 = vmatprep.mubr.f32.mxu0 0.0
    %186 = vmatmul.mubr.f32.gmra.mxu0 %v64
    %v187 = vpop.f32.mrf.mxu0
    %v188 = vadd.f32 %v46, %v187
    %v189 = vpop.f32.mrf.mxu0
    %190 = vmatprep.mubr.f32.mxu0 0.0
    %191 = vmatmul.mubr.f32.gmra.mxu0 %v67
    %v192 = vpop.f32.mrf.mxu0
    %v193 = vadd.f32 %v46, %v192
    %v194 = vpop.f32.mrf.mxu0
    %195 = vmatprep.mubr.f32.mxu0 0.0
    %196 = vmatmul.mubr.f32.gmra.mxu0 %v70
    %v197 = vpop.f32.mrf.mxu0
    %v198 = vadd.f32 %v46, %v197
    %v199 = vpop.f32.mrf.mxu0
    %200 = vmatprep.mubr.f32.mxu0 0.0
    %201 = vmatmul.mubr.f32.gmra.mxu0 %v73
    %v202 = vpop.f32.mrf.mxu0
    %v203 = vadd.f32 %v46, %v202
    %v204 = vpop.f32.mrf.mxu0
    %205 = vmatprep.mubr.f32.mxu0 0.0
    %206 = vmatmul.mubr.f32.gmra.mxu0 %v76
    %v207 = vpop.f32.mrf.mxu0
    %v208 = vadd.f32 %v46, %v207
    %v209 = vpop.f32.mrf.mxu0
    %210 = vmatprep.mubr.f32.mxu0 0.0
    %211 = vmatmul.mubr.f32.gmra.mxu0 %v79
    %v212 = vpop.f32.mrf.mxu0
    %v213 = vadd.f32 %v46, %v212
    %v214 = vpop.f32.mrf.mxu0
    %215 = vmatprep.mubr.f32.mxu0 0.0
    %216 = vmatmul.mubr.f32.gmra.mxu0 %v82
    %v217 = vpop.f32.mrf.mxu0
    %v218 = vadd.f32 %v46, %v217
    %v219 = vpop.f32.mrf.mxu0
    %220 = vmatprep.mubr.f32.mxu0 0.0
    %221 = vmatmul.mubr.f32.gmra.mxu0 %v85
    %v222 = vpop.f32.mrf.mxu0
    %v223 = vadd.f32 %v46, %v222
    %v224 = vpop.f32.mrf.mxu0
    %225 = vmatprep.mubr.f32.mxu0 0.0
    %226 = vmatmul.mubr.f32.gmra.mxu0 %v88
    %v227 = vpop.f32.mrf.mxu0
    %v228 = vadd.f32 %v46, %v227
    %v229 = vpop.f32.mrf.mxu0
    %230 = vmatprep.mubr.f32.mxu0 0.0
    %231 = vmatmul.mubr.f32.gmra.mxu0 %v91
    %v232 = vpop.f32.mrf.mxu0
    %v233 = vadd.f32 %v46, %v232
    %v234 = vpop.f32.mrf.mxu0
    %235 = vmatprep.mubr.f32.mxu0 0.0
    %236 = vmatmul.mubr.f32.gmra.mxu0 %v94
    %v237 = vpop.f32.mrf.mxu0
    %v238 = vadd.f32 %v46, %v237
    %v239 = vpop.f32.mrf.mxu0
    %240 = vdwg.mxu0
    %v241 = vmax.f32 %v163, 0.0
    %v242 = vmax.f32 %v168, 0.0
    %v243 = vmax.f32 %v173, 0.0
    %v244 = vmax.f32 %v178, 0.0
    %v245 = vmax.f32 %v183, 0.0
    %v246 = vmax.f32 %v188, 0.0
    %v247 = vmax.f32 %v193, 0.0
    %v248 = vmax.f32 %v198, 0.0
    %v249 = vmax.f32 %v203, 0.0
    %v250 = vmax.f32 %v208, 0.0
    %v251 = vmax.f32 %v213, 0.0
    %v252 = vmax.f32 %v218, 0.0
    %v253 = vmax.f32 %v223, 0.0
    %v254 = vmax.f32 %v228, 0.0
    %v255 = vmax.f32 %v233, 0.0
    %v256 = vmax.f32 %v238, 0.0
    %261 = vrot.lane.b32.xlu0 %v245, 8
    %v262 = vpop.permute.xlu0 %261
    %263 = vrot.lane.b32.xlu0 %v246, 8
    %v264 = vpop.permute.xlu0 %263
    %265 = vrot.lane.b32.xlu0 %v247, 8
    %v266 = vpop.permute.xlu0 %265
    %267 = vrot.lane.b32.xlu0 %v248, 8
    %v268 = vpop.permute.xlu0 %267
    %277 = vrot.lane.b32.xlu0 %v249, 16
    %v278 = vpop.permute.xlu0 %277
    %279 = vrot.lane.b32.xlu0 %v250, 16
    %v280 = vpop.permute.xlu0 %279
    %281 = vrot.lane.b32.xlu0 %v251, 16
    %v282 = vpop.permute.xlu0 %281
    %283 = vrot.lane.b32.xlu0 %v252, 16
    %v284 = vpop.permute.xlu0 %283
    %293 = vrot.lane.b32.xlu0 %v253, 24
    %v294 = vpop.permute.xlu0 %293
    %295 = vrot.lane.b32.xlu0 %v254, 24
    %v296 = vpop.permute.xlu0 %295
    %297 = vrot.lane.b32.xlu0 %v255, 24
    %v298 = vpop.permute.xlu0 %297
    %299 = vrot.lane.b32.xlu0 %v256, 24
    %v300 = vpop.permute.xlu0 %299
    %vm305 = vcmask 64512
    %v306 = vsel %vm305, %v241, %v262
    %v307 = vsel %vm305, %v242, %v264
    %v308 = vsel %vm305, %v243, %v266
    %v309 = vsel %vm305, %v244, %v268
    %v310 = vsel %vm47, %v306, %v278
    %v311 = vsel %vm47, %v307, %v280
    %v312 = vsel %vm47, %v308, %v282
    %v313 = vsel %vm47, %v309, %v284
    %vm314 = vcmask 195584
    %v315 = vsel %vm314, %v310, %v294
    %v316 = vsel %vm314, %v311, %v296
    %v317 = vsel %vm314, %v312, %v298
    %v318 = vsel %vm314, %v313, %v300
    %v319 = vld [vmem:[%s1 + $0x10] sm:$0xff]
    %v320 = vld [vmem:[%s1 + $0x18] sm:$0xff]
    %v321 = vld [vmem:[%s1 + $0x20] sm:$0xff]
    %v322 = vld [vmem:[%s1 + $0x28] sm:$0xff]
    %v323 = vlaneseq
    %v324 = vshrl.u32 %v323, 7
    %v325 = vsub.s32 1, %v324
    %v326 = vrot.slane %v40, %v325
    %vm327 = vcmask 261120
    %v329 = vsel %vm327, %v315, 0
    %v332 = vsel %vm327, %v316, 0
    %v335 = vsel %vm327, %v317, 0
    %v338 = vsel %vm327, %v318, 0
    %340 = vmatprep.subr.mxu0 0.0
    %341 = vmatpush1.msra.mxu0 0.0
    %342 = vmatprep.subr.mxu0 0.0
    %343 = vmatpush1.msra.mxu0 0.0
    %344 = vmatprep.subr.mxu0 0.0
    %345 = vmatpush1.msra.mxu0 0.0
    %346 = vmatprep.subr.mxu0 0.0
    %347 = vmatpush1.msra.mxu0 0.0
    %348 = vmatprep.subr.mxu0 0.0
    %349 = vmatpush1.msra.mxu0 0.0
    %350 = vmatprep.subr.mxu0 0.0
    %351 = vmatpush1.msra.mxu0 0.0
    %352 = vmatprep.subr.mxu0 0.0
    %353 = vmatpush1.msra.mxu0 0.0
    %354 = vmatprep.subr.mxu0 0.0
    %355 = vmatpush1.msra.mxu0 0.0
    %356 = vmatprep.subr.mxu0 0.0
    %357 = vmatpush1.msra.mxu0 0.0
    %358 = vmatprep.subr.mxu0 0.0
    %359 = vmatpush1.msra.mxu0 0.0
    %360 = vmatprep.subr.mxu0 0.0
    %361 = vmatpush1.msra.mxu0 0.0
    %362 = vmatprep.subr.mxu0 0.0
    %363 = vmatpush1.msra.mxu0 0.0
    %364 = vmatprep.subr.mxu0 0.0
    %365 = vmatpush1.msra.mxu0 %v322
    %366 = vmatprep.subr.mxu0 0.0
    %367 = vmatpush1.msra.mxu0 %v321
    %368 = vmatprep.subr.mxu0 0.0
    %369 = vmatpush1.msra.mxu0 %v320
    %370 = vmatprep.subr.mxu0 0.0
    %371 = vmatpush1.msra.mxu0 %v319
    %372 = vmatprep.subr.mxu0 0.0
    %373 = vmatpush2.msra.mxu0 0.0
    %374 = vmatprep.subr.mxu0 0.0
    %375 = vmatpush2.msra.mxu0 0.0
    %376 = vmatprep.subr.mxu0 0.0
    %377 = vmatpush2.msra.mxu0 0.0
    %378 = vmatprep.subr.mxu0 0.0
    %379 = vmatpush2.msra.mxu0 0.0
    %380 = vmatprep.subr.mxu0 0.0
    %381 = vmatpush2.msra.mxu0 0.0
    %382 = vmatprep.subr.mxu0 0.0
    %383 = vmatpush2.msra.mxu0 0.0
    %384 = vmatprep.subr.mxu0 0.0
    %385 = vmatpush2.msra.mxu0 0.0
    %386 = vmatprep.subr.mxu0 0.0
    %387 = vmatpush2.msra.mxu0 0.0
    %388 = vmatprep.subr.mxu0 0.0
    %389 = vmatpush2.msra.mxu0 0.0
    %390 = vmatprep.subr.mxu0 0.0
    %391 = vmatpush2.msra.mxu0 0.0
    %392 = vmatprep.subr.mxu0 0.0
    %393 = vmatpush2.msra.mxu0 0.0
    %394 = vmatprep.subr.mxu0 0.0
    %395 = vmatpush2.msra.mxu0 0.0
    %396 = vmatprep.subr.mxu0 0.0
    %397 = vmatpush2.msra.mxu0 0.0
    %398 = vmatprep.subr.mxu0 0.0
    %399 = vmatpush2.msra.mxu0 0.0
    %400 = vmatprep.subr.mxu0 0.0
    %401 = vmatpush2.msra.mxu0 0.0
    %402 = vmatprep.subr.mxu0 0.0
    %403 = vmatpush2.msra.mxu0 0.0
    %404 = vmatprep.mubr.f32.mxu0 0.0
    %405 = vmatmul.mubr.f32.gmra.mxu0 %v329
    %v406 = vpop.f32.mrf.mxu0
    %v407 = vadd.f32 %v326, %v406
    %v408 = vpop.f32.mrf.mxu0
    %409 = vmatprep.mubr.f32.mxu0 0.0
    %410 = vmatmul.mubr.f32.gmra.mxu0 %v332
    %v411 = vpop.f32.mrf.mxu0
    %v412 = vadd.f32 %v326, %v411
    %v413 = vpop.f32.mrf.mxu0
    %414 = vmatprep.mubr.f32.mxu0 0.0
    %415 = vmatmul.mubr.f32.gmra.mxu0 %v335
    %v416 = vpop.f32.mrf.mxu0
    %v417 = vadd.f32 %v326, %v416
    %v418 = vpop.f32.mrf.mxu0
    %419 = vmatprep.mubr.f32.mxu0 0.0
    %420 = vmatmul.mubr.f32.gmra.mxu0 %v338
    %v421 = vpop.f32.mrf.mxu0
    %v422 = vadd.f32 %v326, %v421
    %v423 = vpop.f32.mrf.mxu0
    %424 = vdwg.mxu0
    %v425 = vmax.f32 %v407, 0.0
    %v426 = vmax.f32 %v412, 0.0
    %v427 = vmax.f32 %v417, 0.0
    %v428 = vmax.f32 %v422, 0.0
    %430 = vrot.lane.b32.xlu0 %v426, 8
    %v431 = vpop.permute.xlu0 %430
    %434 = vrot.lane.b32.xlu0 %v427, 16
    %v435 = vpop.permute.xlu0 %434
    %438 = vrot.lane.b32.xlu0 %v428, 24
    %v439 = vpop.permute.xlu0 %438
    %v441 = vsel %vm305, %v425, %v431
    %v442 = vsel %vm47, %v441, %v435
    %v443 = vsel %vm314, %v442, %v439
    %v444 = vld [vmem:[%s1 + $0x30] sm:$0xff]
    %v445 = vld [vmem:[%s1 + $0x38] sm:$0xff]
    %v446 = vld [vmem:[%s1 + $0x40] sm:$0xff]
    %v447 = vld [vmem:[%s1 + $0x48] sm:$0xff]
    %v448 = vlaneseq
    %v449 = vshrl.u32 %v448, 7
    %v450 = vsub.s32 2, %v449
    %v451 = vrot.slane %v40, %v450
    %v453 = vsel %vm327, %v443, 0
    %455 = vmatprep.subr.mxu0 0.0
    %456 = vmatpush1.msra.mxu0 0.0
    %457 = vmatprep.subr.mxu0 0.0
    %458 = vmatpush1.msra.mxu0 0.0
    %459 = vmatprep.subr.mxu0 0.0
    %460 = vmatpush1.msra.mxu0 0.0
    %461 = vmatprep.subr.mxu0 0.0
    %462 = vmatpush1.msra.mxu0 0.0
    %463 = vmatprep.subr.mxu0 0.0
    %464 = vmatpush1.msra.mxu0 0.0
    %465 = vmatprep.subr.mxu0 0.0
    %466 = vmatpush1.msra.mxu0 0.0
    %467 = vmatprep.subr.mxu0 0.0
    %468 = vmatpush1.msra.mxu0 0.0
    %469 = vmatprep.subr.mxu0 0.0
    %470 = vmatpush1.msra.mxu0 0.0
    %471 = vmatprep.subr.mxu0 0.0
    %472 = vmatpush1.msra.mxu0 0.0
    %473 = vmatprep.subr.mxu0 0.0
    %474 = vmatpush1.msra.mxu0 0.0
    %475 = vmatprep.subr.mxu0 0.0
    %476 = vmatpush1.msra.mxu0 0.0
    %477 = vmatprep.subr.mxu0 0.0
    %478 = vmatpush1.msra.mxu0 0.0
    %479 = vmatprep.subr.mxu0 0.0
    %480 = vmatpush1.msra.mxu0 %v447
    %481 = vmatprep.subr.mxu0 0.0
    %482 = vmatpush1.msra.mxu0 %v446
    %483 = vmatprep.subr.mxu0 0.0
    %484 = vmatpush1.msra.mxu0 %v445
    %485 = vmatprep.subr.mxu0 0.0
    %486 = vmatpush1.msra.mxu0 %v444
    %487 = vmatprep.subr.mxu0 0.0
    %488 = vmatpush2.msra.mxu0 0.0
    %489 = vmatprep.subr.mxu0 0.0
    %490 = vmatpush2.msra.mxu0 0.0
    %491 = vmatprep.subr.mxu0 0.0
    %492 = vmatpush2.msra.mxu0 0.0
    %493 = vmatprep.subr.mxu0 0.0
    %494 = vmatpush2.msra.mxu0 0.0
    %495 = vmatprep.subr.mxu0 0.0
    %496 = vmatpush2.msra.mxu0 0.0
    %497 = vmatprep.subr.mxu0 0.0
    %498 = vmatpush2.msra.mxu0 0.0
    %499 = vmatprep.subr.mxu0 0.0
    %500 = vmatpush2.msra.mxu0 0.0
    %501 = vmatprep.subr.mxu0 0.0
    %502 = vmatpush2.msra.mxu0 0.0
    %503 = vmatprep.subr.mxu0 0.0
    %504 = vmatpush2.msra.mxu0 0.0
    %505 = vmatprep.subr.mxu0 0.0
    %506 = vmatpush2.msra.mxu0 0.0
    %507 = vmatprep.subr.mxu0 0.0
    %508 = vmatpush2.msra.mxu0 0.0
    %509 = vmatprep.subr.mxu0 0.0
    %510 = vmatpush2.msra.mxu0 0.0
    %511 = vmatprep.subr.mxu0 0.0
    %512 = vmatpush2.msra.mxu0 0.0
    %513 = vmatprep.subr.mxu0 0.0
    %514 = vmatpush2.msra.mxu0 0.0
    %515 = vmatprep.subr.mxu0 0.0
    %516 = vmatpush2.msra.mxu0 0.0
    %517 = vmatprep.subr.mxu0 0.0
    %518 = vmatpush2.msra.mxu0 0.0
    %519 = vmatprep.mubr.f32.mxu0 0.0
    %520 = vmatmul.mubr.f32.gmra.mxu0 %v453
    %v521 = vpop.f32.mrf.mxu0
    %v522 = vadd.f32 %v451, %v521
    %v523 = vpop.f32.mrf.mxu0
    %524 = vdwg.mxu0
    %v525 = vmax.f32 %v522, 0.0
    %v527 = vrot.slane %v525, 2
    %528 = vrot.lane.b32.xlu0 %v527, 8
    %v529 = vpop.permute.xlu0 %528
    %v531 = vrot.slane %v525, 4
    %532 = vrot.lane.b32.xlu0 %v531, 16
    %v533 = vpop.permute.xlu0 %532
    %v535 = vrot.slane %v525, 6
    %536 = vrot.lane.b32.xlu0 %v535, 24
    %v537 = vpop.permute.xlu0 %536
    %v539 = vsel %vm305, %v525, %v529
    %v540 = vsel %vm47, %v539, %v533
    %v541 = vsel %vm314, %v540, %v537
    %v542 = vld [vmem:[%s3] sm:$0xff]
    %v543 = vld [vmem:[%s3 + $0x8] sm:$0xff]
    %v544 = vld [vmem:[%s3 + $0x10] sm:$0xff]
    %v545 = vld [vmem:[%s3 + $0x18] sm:$0xff]
    %v546 = vlaneseq
    %v547 = vshrl.u32 %v546, 7
    %v548 = vsub.s32 3, %v547
    %v549 = vrot.slane %v40, %v548
    %v551 = vsel %vm327, %v541, 0
    %553 = vmatprep.subr.mxu0 0.0
    %554 = vmatpush1.msra.mxu0 0.0
    %555 = vmatprep.subr.mxu0 0.0
    %556 = vmatpush1.msra.mxu0 0.0
    %557 = vmatprep.subr.mxu0 0.0
    %558 = vmatpush1.msra.mxu0 0.0
    %559 = vmatprep.subr.mxu0 0.0
    %560 = vmatpush1.msra.mxu0 0.0
    %561 = vmatprep.subr.mxu0 0.0
    %562 = vmatpush1.msra.mxu0 0.0
    %563 = vmatprep.subr.mxu0 0.0
    %564 = vmatpush1.msra.mxu0 0.0
    %565 = vmatprep.subr.mxu0 0.0
    %566 = vmatpush1.msra.mxu0 0.0
    %567 = vmatprep.subr.mxu0 0.0
    %568 = vmatpush1.msra.mxu0 0.0
    %569 = vmatprep.subr.mxu0 0.0
    %570 = vmatpush1.msra.mxu0 0.0
    %571 = vmatprep.subr.mxu0 0.0
    %572 = vmatpush1.msra.mxu0 0.0
    %573 = vmatprep.subr.mxu0 0.0
    %574 = vmatpush1.msra.mxu0 0.0
    %575 = vmatprep.subr.mxu0 0.0
    %576 = vmatpush1.msra.mxu0 0.0
    %577 = vmatprep.subr.mxu0 0.0
    %578 = vmatpush1.msra.mxu0 %v545
    %579 = vmatprep.subr.mxu0 0.0
    %580 = vmatpush1.msra.mxu0 %v544
    %581 = vmatprep.subr.mxu0 0.0
    %582 = vmatpush1.msra.mxu0 %v543
    %583 = vmatprep.subr.mxu0 0.0
    %584 = vmatpush1.msra.mxu0 %v542
    %585 = vmatprep.subr.mxu0 0.0
    %586 = vmatpush2.msra.mxu0 0.0
    %587 = vmatprep.subr.mxu0 0.0
    %588 = vmatpush2.msra.mxu0 0.0
    %589 = vmatprep.subr.mxu0 0.0
    %590 = vmatpush2.msra.mxu0 0.0
    %591 = vmatprep.subr.mxu0 0.0
    %592 = vmatpush2.msra.mxu0 0.0
    %593 = vmatprep.subr.mxu0 0.0
    %594 = vmatpush2.msra.mxu0 0.0
    %595 = vmatprep.subr.mxu0 0.0
    %596 = vmatpush2.msra.mxu0 0.0
    %597 = vmatprep.subr.mxu0 0.0
    %598 = vmatpush2.msra.mxu0 0.0
    %599 = vmatprep.subr.mxu0 0.0
    %600 = vmatpush2.msra.mxu0 0.0
    %601 = vmatprep.subr.mxu0 0.0
    %602 = vmatpush2.msra.mxu0 0.0
    %603 = vmatprep.subr.mxu0 0.0
    %604 = vmatpush2.msra.mxu0 0.0
    %605 = vmatprep.subr.mxu0 0.0
    %606 = vmatpush2.msra.mxu0 0.0
    %607 = vmatprep.subr.mxu0 0.0
    %608 = vmatpush2.msra.mxu0 0.0
    %609 = vmatprep.subr.mxu0 0.0
    %610 = vmatpush2.msra.mxu0 0.0
    %611 = vmatprep.subr.mxu0 0.0
    %612 = vmatpush2.msra.mxu0 0.0
    %613 = vmatprep.subr.mxu0 0.0
    %614 = vmatpush2.msra.mxu0 0.0
    %615 = vmatprep.subr.mxu0 0.0
    %616 = vmatpush2.msra.mxu0 0.0
    %617 = vmatprep.mubr.f32.mxu0 0.0
    %618 = vmatmul.mubr.f32.gmra.mxu0 %v551
    %v619 = vpop.f32.mrf.mxu0
    %v620 = vadd.f32 %v549, %v619
    %v621 = vpop.f32.mrf.mxu0
    %622 = vdwg.mxu0
    %v623 = vmax.f32 %v620, 0.0
    %v624 = vld [vmem:[%s4] sm:$0xff]
    %v625 = vld [vmem:[%s4 + $0x8] sm:$0xff]
    %v626 = vld [vmem:[%s4 + $0x10] sm:$0xff]
    %v627 = vld [vmem:[%s4 + $0x18] sm:$0xff]
    %v628 = vld [vmem:[%s4 + $0x20] sm:$0xff]
    %v629 = vld [vmem:[%s4 + $0x28] sm:$0xff]
    %v630 = vld [vmem:[%s4 + $0x30] sm:$0xff]
    %v631 = vld [vmem:[%s4 + $0x38] sm:$0xff]
    %v632 = vld [vmem:[%s4 + $0x40] sm:$0xff]
    %v633 = vld [vmem:[%s4 + $0x48] sm:$0xff]
    %v634 = vld [vmem:[%s4 + $0x50] sm:$0xff]
    %v635 = vld [vmem:[%s4 + $0x58] sm:$0xff]
    %v636 = vld [vmem:[%s4 + $0x60] sm:$0xff]
    %v637 = vld [vmem:[%s4 + $0x68] sm:$0xff]
    %v638 = vld [vmem:[%s4 + $0x70] sm:$0xff]
    %v639 = vlaneseq
    %v640 = vshrl.u32 %v639, 7
    %v641 = vsub.s32 4, %v640
    %v642 = vrot.slane %v40, %v641
    %vm643 = vcmask 982016
    %v645 = vsel %vm643, %v623, 0
    %647 = vmatprep.subr.mxu0 0.0
    %648 = vmatpush1.msra.mxu0 0.0
    %649 = vmatprep.subr.mxu0 0.0
    %650 = vmatpush1.msra.mxu0 %v638
    %651 = vmatprep.subr.mxu0 0.0
    %652 = vmatpush1.msra.mxu0 %v637
    %653 = vmatprep.subr.mxu0 0.0
    %654 = vmatpush1.msra.mxu0 %v636
    %655 = vmatprep.subr.mxu0 0.0
    %656 = vmatpush1.msra.mxu0 %v635
    %657 = vmatprep.subr.mxu0 0.0
    %658 = vmatpush1.msra.mxu0 %v634
    %659 = vmatprep.subr.mxu0 0.0
    %660 = vmatpush1.msra.mxu0 %v633
    %661 = vmatprep.subr.mxu0 0.0
    %662 = vmatpush1.msra.mxu0 %v632
    %663 = vmatprep.subr.mxu0 0.0
    %664 = vmatpush1.msra.mxu0 %v631
    %665 = vmatprep.subr.mxu0 0.0
    %666 = vmatpush1.msra.mxu0 %v630
    %667 = vmatprep.subr.mxu0 0.0
    %668 = vmatpush1.msra.mxu0 %v629
    %669 = vmatprep.subr.mxu0 0.0
    %670 = vmatpush1.msra.mxu0 %v628
    %671 = vmatprep.subr.mxu0 0.0
    %672 = vmatpush1.msra.mxu0 %v627
    %673 = vmatprep.subr.mxu0 0.0
    %674 = vmatpush1.msra.mxu0 %v626
    %675 = vmatprep.subr.mxu0 0.0
    %676 = vmatpush1.msra.mxu0 %v625
    %677 = vmatprep.subr.mxu0 0.0
    %678 = vmatpush1.msra.mxu0 %v624
    %679 = vmatprep.subr.mxu0 0.0
    %680 = vmatpush2.msra.mxu0 0.0
    %681 = vmatprep.subr.mxu0 0.0
    %682 = vmatpush2.msra.mxu0 0.0
    %683 = vmatprep.subr.mxu0 0.0
    %684 = vmatpush2.msra.mxu0 0.0
    %685 = vmatprep.subr.mxu0 0.0
    %686 = vmatpush2.msra.mxu0 0.0
    %687 = vmatprep.subr.mxu0 0.0
    %688 = vmatpush2.msra.mxu0 0.0
    %689 = vmatprep.subr.mxu0 0.0
    %690 = vmatpush2.msra.mxu0 0.0
    %691 = vmatprep.subr.mxu0 0.0
    %692 = vmatpush2.msra.mxu0 0.0
    %693 = vmatprep.subr.mxu0 0.0
    %694 = vmatpush2.msra.mxu0 0.0
    %695 = vmatprep.subr.mxu0 0.0
    %696 = vmatpush2.msra.mxu0 0.0
    %697 = vmatprep.subr.mxu0 0.0
    %698 = vmatpush2.msra.mxu0 0.0
    %699 = vmatprep.subr.mxu0 0.0
    %700 = vmatpush2.msra.mxu0 0.0
    %701 = vmatprep.subr.mxu0 0.0
    %702 = vmatpush2.msra.mxu0 0.0
    %703 = vmatprep.subr.mxu0 0.0
    %704 = vmatpush2.msra.mxu0 0.0
    %705 = vmatprep.subr.mxu0 0.0
    %706 = vmatpush2.msra.mxu0 0.0
    %707 = vmatprep.subr.mxu0 0.0
    %708 = vmatpush2.msra.mxu0 0.0
    %709 = vmatprep.subr.mxu0 0.0
    %710 = vmatpush2.msra.mxu0 0.0
    %711 = vmatprep.mubr.f32.mxu0 0.0
    %712 = vmatmul.mubr.f32.gmra.mxu0 %v645
    %v713 = vpop.f32.mrf.mxu0
    %v714 = vadd.f32 %v642, %v713
    %v715 = vpop.f32.mrf.mxu0
    %716 = vdwg.mxu0
    %v717 = vmax.f32 %v714, 0.0
    %v718 = vld [vmem:[%s5] sm:$0xff]
    %v719 = vld [vmem:[%s5 + $0x8] sm:$0xff]
    %v720 = vld [vmem:[%s5 + $0x10] sm:$0xff]
    %v721 = vld [vmem:[%s5 + $0x18] sm:$0xff]
    %v722 = vld [vmem:[%s5 + $0x20] sm:$0xff]
    %v723 = vld [vmem:[%s5 + $0x28] sm:$0xff]
    %v724 = vld [vmem:[%s5 + $0x30] sm:$0xff]
    %v725 = vld [vmem:[%s5 + $0x38] sm:$0xff]
    %v726 = vld [vmem:[%s5 + $0x40] sm:$0xff]
    %v727 = vld [vmem:[%s5 + $0x48] sm:$0xff]
    %v728 = vld [vmem:[%s5 + $0x50] sm:$0xf]
    %v729 = vlaneseq
    %v730 = vshrl.u32 %v729, 7
    %v731 = vsub.s32 5, %v730
    %v732 = vrot.slane %v40, %v731
    %vm733 = vcmask 687104
    %v735 = vsel %vm733, %v717, 0
    %vm737 = vcmask 1043456
    %v739 = vsel %vm737, %v728, 0
    %741 = vmatprep.subr.mxu0 0.0
    %742 = vmatpush1.msra.mxu0 0.0
    %743 = vmatprep.subr.mxu0 0.0
    %744 = vmatpush1.msra.mxu0 0.0
    %745 = vmatprep.subr.mxu0 0.0
    %746 = vmatpush1.msra.mxu0 0.0
    %747 = vmatprep.subr.mxu0 0.0
    %748 = vmatpush1.msra.mxu0 0.0
    %749 = vmatprep.subr.mxu0 0.0
    %750 = vmatpush1.msra.mxu0 0.0
    %751 = vmatprep.subr.mxu0 0.0
    %752 = vmatpush1.msra.mxu0 %v739
    %753 = vmatprep.subr.mxu0 0.0
    %754 = vmatpush1.msra.mxu0 %v727
    %755 = vmatprep.subr.mxu0 0.0
    %756 = vmatpush1.msra.mxu0 %v726
    %757 = vmatprep.subr.mxu0 0.0
    %758 = vmatpush1.msra.mxu0 %v725
    %759 = vmatprep.subr.mxu0 0.0
    %760 = vmatpush1.msra.mxu0 %v724
    %761 = vmatprep.subr.mxu0 0.0
    %762 = vmatpush1.msra.mxu0 %v723
    %763 = vmatprep.subr.mxu0 0.0
    %764 = vmatpush1.msra.mxu0 %v722
    %765 = vmatprep.subr.mxu0 0.0
    %766 = vmatpush1.msra.mxu0 %v721
    %767 = vmatprep.subr.mxu0 0.0
    %768 = vmatpush1.msra.mxu0 %v720
    %769 = vmatprep.subr.mxu0 0.0
    %770 = vmatpush1.msra.mxu0 %v719
    %771 = vmatprep.subr.mxu0 0.0
    %772 = vmatpush1.msra.mxu0 %v718
    %773 = vmatprep.subr.mxu0 0.0
    %774 = vmatpush2.msra.mxu0 0.0
    %775 = vmatprep.subr.mxu0 0.0
    %776 = vmatpush2.msra.mxu0 0.0
    %777 = vmatprep.subr.mxu0 0.0
    %778 = vmatpush2.msra.mxu0 0.0
    %779 = vmatprep.subr.mxu0 0.0
    %780 = vmatpush2.msra.mxu0 0.0
    %781 = vmatprep.subr.mxu0 0.0
    %782 = vmatpush2.msra.mxu0 0.0
    %783 = vmatprep.subr.mxu0 0.0
    %784 = vmatpush2.msra.mxu0 0.0
    %785 = vmatprep.subr.mxu0 0.0
    %786 = vmatpush2.msra.mxu0 0.0
    %787 = vmatprep.subr.mxu0 0.0
    %788 = vmatpush2.msra.mxu0 0.0
    %789 = vmatprep.subr.mxu0 0.0
    %790 = vmatpush2.msra.mxu0 0.0
    %791 = vmatprep.subr.mxu0 0.0
    %792 = vmatpush2.msra.mxu0 0.0
    %793 = vmatprep.subr.mxu0 0.0
    %794 = vmatpush2.msra.mxu0 0.0
    %795 = vmatprep.subr.mxu0 0.0
    %796 = vmatpush2.msra.mxu0 0.0
    %797 = vmatprep.subr.mxu0 0.0
    %798 = vmatpush2.msra.mxu0 0.0
    %799 = vmatprep.subr.mxu0 0.0
    %800 = vmatpush2.msra.mxu0 0.0
    %801 = vmatprep.subr.mxu0 0.0
    %802 = vmatpush2.msra.mxu0 0.0
    %803 = vmatprep.subr.mxu0 0.0
    %804 = vmatpush2.msra.mxu0 0.0
    %805 = vmatprep.mubr.f32.mxu0 0.0
    %806 = vmatmul.mubr.f32.gmra.mxu0 %v735
    %v807 = vpop.f32.mrf.mxu0
    %v808 = vadd.f32 %v732, %v807
    %v809 = vpop.f32.mrf.mxu0
    %810 = vdwg.mxu0
    %vm811 = vcmask 254976
    %812 = vst.msk [vmem:[#allocation2] sm:$0x3] %vm811, %v808
    // Predicated region
    $region26: #{cnn_base_forward.1} parent=1 // pred_check
      _
    $region27: #{cnn_base_forward.1} parent=1 // pred_check_branch
      %814 = sbr.rel (0) target = $region29
    $region28: #{cnn_base_forward.1} parent=1 // pred_region
      %s816 = ssub.s32 32, 32
      %817 = vsyncadd [#allocation3], %s816
      %s819 = sshll.u32 [#allocation2], 4
      %s820 = int_to_ptr.vmem [resolvable:$true] %s819
      %822 = dma.vmem_to_hbm [thread:$0]  %s820, 32, %s6, [#allocation3]
    $region29: #{cnn_base_forward.1} parent=1 // pred_fallthru
      _
    // Predicated region
    $region30: #{cnn_base_forward.1} parent=1 // pred_check
      _
    $region31: #{cnn_base_forward.1} parent=1 // pred_check_branch
      %824 = sbr.rel (0) target = $region33
    $region32: #{cnn_base_forward.1} parent=1 // pred_region
      %825 = dma.done [#allocation3], 32
    $region33: #{cnn_base_forward.1} parent=1 // pred_fallthru
      _
    %826 = vsyncpa [#allocation3], 1

</llo_original>
